<compile_context>
chip_gen: v6e
topology: v6e:2x2x1
jax: 0.10.0
libtpu: 0.0.40
codegen_flags: <defaults>
</compile_context>

<pallas_src>
import math

import jax
import jax.numpy as jnp
from jax.experimental import pallas as pl
from jax.experimental.pallas import tpu as pltpu


_INV_SQRT2 = 1.0 / math.sqrt(2.0)


def _round_up(x, m):
    return (x + m - 1) // m * m


def _pick_hidden_tile(hid_p, cap=512):
    """Largest multiple of 128 that divides hid_p and is <= cap."""
    th = 128
    for cand in range(128, min(hid_p, cap) + 1, 128):
        if hid_p % cand == 0:
            th = cand
    return th


# ----------------------------------------------------------------------------- kernel
def _ffn_kernel(x_ref, w1_ref, b1_ref, w2_ref, b2_ref, o_ref, acc_ref):
    # x_ref  : (TM, Dp) bf16    w1_ref : (Dp, TH) bf16    b1_ref : (1, TH) f32
    # w2_ref : (TH, Dp) bf16    b2_ref : (1, Dp)  f32
    # o_ref  : (TM, Dp) f32     acc_ref: (TM, Dp) f32 scratch (persists over hidden axis)
    h_idx = pl.program_id(1)

    @pl.when(h_idx == 0)
    def _():
        acc_ref[...] = jnp.zeros_like(acc_ref)

    # First Bayesian linear: bf16 operands on the MXU, f32 accumulation, f32 bias.
    h = jnp.dot(x_ref[...], w1_ref[...], preferred_element_type=jnp.float32)
    h = h + b1_ref[...]

    # Exact GELU (matches torch nn.GELU() default, approximate='none'), in f32.
    g = 0.5 * h * (1.0 + jax.lax.erf(h * jnp.float32(_INV_SQRT2)))

    # (Dropout p=0.0 -> identity.)

    # Second Bayesian linear: partial sum over this hidden tile into the f32 accumulator.
    acc_ref[...] += jnp.dot(g.astype(w2_ref.dtype), w2_ref[...],
                            preferred_element_type=jnp.float32)

    @pl.when(h_idx == pl.num_programs(1) - 1)
    def _():
        o_ref[...] = (acc_ref[...] + b2_ref[...]).astype(o_ref.dtype)


# ------------------------------------------------------------------- parameter sampling
def _sample_bayes_linear(key, mu_w, log_sigma_w, mu_b, log_sigma_b):
    """Reparameterized sample of a BayesLinear layer's weight/bias."""
    k_w, k_b = jax.random.split(key)
    eps_w = jax.random.normal(k_w, mu_w.shape, mu_w.dtype)
    eps_b = jax.random.normal(k_b, mu_b.shape, mu_b.dtype)
    w = mu_w + jnp.exp(log_sigma_w) * eps_w
    b = mu_b + jnp.exp(log_sigma_b) * eps_b
    return w, b


def init_feedforward_params(key, dim, hidden_dim, prior_sigma=0.1):
    """Synthetic init of the BayesLinear variational parameters.

    NOTE: weights are stored in (in_features, out_features) layout (torch stores
    (out, in)); this is purely a storage-layout choice so no host-side transpose
    is ever needed before the kernel.
    """
    k1, k2, k3, k4 = jax.random.split(key, 4)
    log_sigma_init = jnp.float32(math.log(prior_sigma))
    return {
        "w1_mu": jax.random.normal(k1, (dim, hidden_dim), jnp.float32) * 0.02,
        "w1_log_sigma": jnp.full((dim, hidden_dim), log_sigma_init, jnp.float32),
        "b1_mu": jax.random.normal(k2, (hidden_dim,), jnp.float32) * 0.02,
        "b1_log_sigma": jnp.full((hidden_dim,), log_sigma_init, jnp.float32),
        "w2_mu": jax.random.normal(k3, (hidden_dim, dim), jnp.float32) * 0.02,
        "w2_log_sigma": jnp.full((hidden_dim, dim), log_sigma_init, jnp.float32),
        "b2_mu": jax.random.normal(k4, (dim,), jnp.float32) * 0.02,
        "b2_log_sigma": jnp.full((dim,), log_sigma_init, jnp.float32),
    }


# ----------------------------------------------------------------------------- wrapper
def feed_forward(x, params, sample_key, *, token_tile=256):
    """x: (batch, seq, dim) f32 -> (batch, seq, dim) f32."""
    batch, seq, dim = x.shape
    hidden_dim = params["w1_mu"].shape[1]

    k1, k2 = jax.random.split(sample_key)
    w1, b1 = _sample_bayes_linear(
        k1, params["w1_mu"], params["w1_log_sigma"],
        params["b1_mu"], params["b1_log_sigma"])
    w2, b2 = _sample_bayes_linear(
        k2, params["w2_mu"], params["w2_log_sigma"],
        params["b2_mu"], params["b2_log_sigma"])

    # ---- padded, MXU-friendly shapes (padding with zeros is exact) ----
    T = batch * seq
    dim_p = _round_up(dim, 128)
    hid_p = _round_up(hidden_dim, 128)
    tm = min(token_tile, _round_up(T, 8))        # token tile (multiple of 8)
    T_p = _round_up(T, tm)
    th = _pick_hidden_tile(hid_p)                # hidden tile (multiple of 128)
    nt, nh = T_p // tm, hid_p // th

    tokens = jnp.zeros((T_p, dim_p), jnp.float32).at[:T, :dim].set(x.reshape(T, dim))
    w1_p = jnp.zeros((dim_p, hid_p), jnp.float32).at[:dim, :hidden_dim].set(w1)
    w2_p = jnp.zeros((hid_p, dim_p), jnp.float32).at[:hidden_dim, :dim].set(w2)
    b1_p = jnp.zeros((1, hid_p), jnp.float32).at[0, :hidden_dim].set(b1)
    b2_p = jnp.zeros((1, dim_p), jnp.float32).at[0, :dim].set(b2)

    # bf16 MXU operands; accumulation / bias / GELU stay f32 inside the kernel.
    tokens_bf = tokens.astype(jnp.bfloat16)
    w1_bf = w1_p.astype(jnp.bfloat16)
    w2_bf = w2_p.astype(jnp.bfloat16)

    # ---- VMEM budget / cost hints ----
    vmem_est = (
        2 * (dim_p * th + th * dim_p) * 2    # double-buffered bf16 weight slabs
        + 2 * tm * dim_p * 2                 # double-buffered bf16 x tiles
        + 2 * tm * dim_p * 4                 # double-buffered f32 out tiles
        + tm * dim_p * 4                     # f32 accumulator scratch
        + tm * th * 4                        # f32 hidden activation temp
        + 2 * (th + dim_p) * 4               # biases
    )
    vmem_limit = int(min(64 * 1024 * 1024, max(2 * vmem_est, 16 * 1024 * 1024)))

    cost = pl.CostEstimate(
        flops=4 * T_p * dim_p * hid_p,
        transcendentals=T_p * hid_p,
        bytes_accessed=(tokens_bf.size * 2 + w1_bf.size * 2 + w2_bf.size * 2
                        + b1_p.size * 4 + b2_p.size * 4 + T_p * dim_p * 4),
    )

    grid_spec = pltpu.PrefetchScalarGridSpec(
        num_scalar_prefetch=0,
        grid=(nt, nh),                                          # hidden = reduction, last
        in_specs=[
            pl.BlockSpec((tm, dim_p), lambda i, h: (i, 0)),     # x tile (resident over h)
            pl.BlockSpec((dim_p, th), lambda i, h: (0, h)),     # w1 hidden-column slab
            pl.BlockSpec((1, th),     lambda i, h: (0, h)),     # b1 slab
            pl.BlockSpec((th, dim_p), lambda i, h: (h, 0)),     # w2 hidden-row slab
            pl.BlockSpec((1, dim_p),  lambda i, h: (0, 0)),     # b2 (resident)
        ],
        out_specs=pl.BlockSpec((tm, dim_p), lambda i, h: (i, 0)),
        scratch_shapes=[pltpu.VMEM((tm, dim_p), jnp.float32)],
    )

    out_p = pl.pallas_call(
        _ffn_kernel,
        out_shape=jax.ShapeDtypeStruct((T_p, dim_p), jnp.float32),
        grid_spec=grid_spec,
        compiler_params=pltpu.CompilerParams(
            dimension_semantics=("parallel", "arbitrary"),
            vmem_limit_bytes=vmem_limit),
        cost_estimate=cost,
    )(tokens_bf, w1_bf, b1_p, w2_bf, b2_p)

    return out_p[:T, :dim].reshape(batch, seq, dim)


# --------------------------------------------------------------------------- references
def _reference_matched(x, params, sample_key):
    """Pure-JAX reference with the kernel's mixed precision (bf16 MXU operands,
    f32 accumulation / bias / GELU)."""
    k1, k2 = jax.random.split(sample_key)
    w1, b1 = _sample_bayes_linear(
        k1, params["w1_mu"], params["w1_log_sigma"],
        params["b1_mu"], params["b1_log_sigma"])
    w2, b2 = _sample_bayes_linear(
        k2, params["w2_mu"], params["w2_log_sigma"],
        params["b2_mu"], params["b2_log_sigma"])
    B, S, D = x.shape
    xt = x.reshape(B * S, D).astype(jnp.bfloat16)
    h = jnp.dot(xt, w1.astype(jnp.bfloat16), preferred_element_type=jnp.float32) + b1
    g = 0.5 * h * (1.0 + jax.lax.erf(h * jnp.float32(_INV_SQRT2)))
    out = jnp.dot(g.astype(jnp.bfloat16), w2.astype(jnp.bfloat16),
                  preferred_element_type=jnp.float32) + b2
    return out.reshape(B, S, D)


def _reference_f32(x, params, sample_key):
    """Pure f32 reference of the original module's forward."""
    k1, k2 = jax.random.split(sample_key)
    w1, b1 = _sample_bayes_linear(
        k1, params["w1_mu"], params["w1_log_sigma"],
        params["b1_mu"], params["b1_log_sigma"])
    w2, b2 = _sample_bayes_linear(
        k2, params["w2_mu"], params["w2_log_sigma"],
        params["b2_mu"], params["b2_log_sigma"])
    h = x @ w1 + b1
    g = 0.5 * h * (1.0 + jax.lax.erf(h * jnp.float32(_INV_SQRT2)))
    return g @ w2 + b2


# -------------------------------------------------------------------------------- main
if __name__ == "__main__":
    batch, seq, dim, hidden_dim = 2, 8, 32, 64

    root = jax.random.PRNGKey(0)
    k_params, k_input, k_sample = jax.random.split(root, 3)

    params = init_feedforward_params(k_params, dim, hidden_dim, prior_sigma=0.1)
    x = jax.random.normal(k_input, (batch, seq, dim), jnp.float32)

    ff = jax.jit(feed_forward)
    y = ff(x, params, k_sample)
    y = jax.block_until_ready(y)
    assert y.shape == (batch, seq, dim)

    # Tight check against a reference using the kernel's exact mixed precision.
    y_matched = _reference_matched(x, params, k_sample)
    assert jnp.allclose(y, y_matched, atol=1e-4, rtol=1e-4), float(
        jnp.max(jnp.abs(y - y_matched)))

    # Loose check against the full-f32 reference (bf16 MXU operands only add ~0.5% error).
    y_f32 = _reference_f32(x, params, k_sample)
    assert jnp.allclose(y, y_f32, atol=5e-2, rtol=5e-2)

    print("KERNEL_OK")
</pallas_src>

<mosaic_0001>
module attributes {stable_mosaic.version = 11 : i64} {
  func.func @_ffn_kernel(%arg0: i32, %arg1: i32, %arg2: memref<16x128xbf16, #tpu.memory_space<vmem>>, %arg3: memref<128x128xbf16, #tpu.memory_space<vmem>>, %arg4: memref<1x128xf32, #tpu.memory_space<vmem>>, %arg5: memref<128x128xbf16, #tpu.memory_space<vmem>>, %arg6: memref<1x128xf32, #tpu.memory_space<vmem>>, %arg7: memref<16x128xf32, #tpu.memory_space<vmem>>, %arg8: memref<16x128xf32, #tpu.memory_space<vmem>>) attributes {dimension_semantics = [#tpu.dimension_semantics<parallel>, #tpu.dimension_semantics<arbitrary>], iteration_bounds = array<i64: 1, 1>, scalar_prefetch = 0 : i64, scratch_operands = 1 : i64, tpu.core_type = #tpu.core_type<tc>, window_params = [{transform_indices = @transform_0, window_bounds = array<i64: 16, 128>}, {transform_indices = @transform_1, window_bounds = array<i64: 128, 128>}, {transform_indices = @transform_2, window_bounds = array<i64: 1, 128>}, {transform_indices = @transform_3, window_bounds = array<i64: 128, 128>}, {pipeline_mode = #tpu.pipeline_mode<synchronous>, transform_indices = @transform_4, window_bounds = array<i64: 1, 128>}, {transform_indices = @transform_5, window_bounds = array<i64: 16, 128>}]} {
    %c0_i32 = arith.constant 0 : i32
    %0 = arith.cmpi eq, %arg1, %c0_i32 : i32
    %1 = arith.extui %0 : i1 to i32
    %c0_i32_0 = arith.constant 0 : i32
    %2 = arith.cmpi ne, %1, %c0_i32_0 : i32
    scf.if %2 {
      %cst_18 = arith.constant 0.000000e+00 : f32
      %26 = vector.broadcast %cst_18 : f32 to vector<16x128xf32>
      %c0_19 = arith.constant 0 : index
      %c0_20 = arith.constant 0 : index
      %27 = vector.load %arg8[%c0_19, %c0_20] : memref<16x128xf32, #tpu.memory_space<vmem>>, vector<16x128xf32>
      tpu.vector_store %arg8[%c0_19, %c0_20], %26 {strides = array<i32>} : memref<16x128xf32, #tpu.memory_space<vmem>>, vector<16x128xf32>,
    } else {
    }
    %c0 = arith.constant 0 : index
    %c0_1 = arith.constant 0 : index
    %3 = vector.load %arg2[%c0, %c0_1] : memref<16x128xbf16, #tpu.memory_space<vmem>>, vector<16x128xbf16>
    %c0_2 = arith.constant 0 : index
    %c0_3 = arith.constant 0 : index
    %4 = vector.load %arg3[%c0_2, %c0_3] : memref<128x128xbf16, #tpu.memory_space<vmem>>, vector<128x128xbf16>
    %cst = arith.constant dense<0.000000e+00> : vector<16x128xf32>
    %5 = tpu.matmul %3, %4, %cst {dimension_numbers = #tpu.dot_dimension_numbers<[1], [0], [0], [1], [0, 0, 1, 1], [], []>} : vector<16x128xbf16>, vector<128x128xbf16>, vector<16x128xf32> -> vector<16x128xf32>
    %c0_4 = arith.constant 0 : index
    %c0_5 = arith.constant 0 : index
    %6 = vector.load %arg4[%c0_4, %c0_5] : memref<1x128xf32, #tpu.memory_space<vmem>>, vector<1x128xf32>
    %7 = vector.broadcast %6 : vector<1x128xf32> to vector<16x128xf32>
    %8 = arith.addf %5, %7 : vector<16x128xf32>
    %cst_6 = arith.constant 5.000000e-01 : f32
    %9 = vector.broadcast %cst_6 : f32 to vector<16x128xf32>
    %10 = arith.mulf %9, %8 : vector<16x128xf32>
    %cst_7 = arith.constant 0.707106769 : f32
    %11 = vector.broadcast %cst_7 : f32 to vector<16x128xf32>
    %12 = arith.mulf %8, %11 : vector<16x128xf32>
    %13 = math.erf %12 : vector<16x128xf32>
    %cst_8 = arith.constant 1.000000e+00 : f32
    %14 = vector.broadcast %cst_8 : f32 to vector<16x128xf32>
    %15 = arith.addf %14, %13 : vector<16x128xf32>
    %16 = arith.mulf %10, %15 : vector<16x128xf32>
    %c0_9 = arith.constant 0 : index
    %c0_10 = arith.constant 0 : index
    %17 = vector.load %arg8[%c0_9, %c0_10] : memref<16x128xf32, #tpu.memory_space<vmem>>, vector<16x128xf32>
    %18 = arith.truncf %16 : vector<16x128xf32> to vector<16x128xbf16>
    %c0_11 = arith.constant 0 : index
    %c0_12 = arith.constant 0 : index
    %19 = vector.load %arg5[%c0_11, %c0_12] : memref<128x128xbf16, #tpu.memory_space<vmem>>, vector<128x128xbf16>
    %cst_13 = arith.constant dense<0.000000e+00> : vector<16x128xf32>
    %20 = tpu.matmul %18, %19, %cst_13 {dimension_numbers = #tpu.dot_dimension_numbers<[1], [0], [0], [1], [0, 0, 1, 1], [], []>} : vector<16x128xbf16>, vector<128x128xbf16>, vector<16x128xf32> -> vector<16x128xf32>
    %21 = arith.addf %17, %20 : vector<16x128xf32>
    %c0_14 = arith.constant 0 : index
    %c0_15 = arith.constant 0 : index
    %22 = vector.load %arg8[%c0_14, %c0_15] : memref<16x128xf32, #tpu.memory_space<vmem>>, vector<16x128xf32>
    tpu.vector_store %arg8[%c0_14, %c0_15], %21 {strides = array<i32>} : memref<16x128xf32, #tpu.memory_space<vmem>>, vector<16x128xf32>,
    %c0_i32_16 = arith.constant 0 : i32
    %23 = arith.cmpi eq, %arg1, %c0_i32_16 : i32
    %24 = arith.extui %23 : i1 to i32
    %c0_i32_17 = arith.constant 0 : i32
    %25 = arith.cmpi ne, %24, %c0_i32_17 : i32
    scf.if %25 {
      %c0_18 = arith.constant 0 : index
      %c0_19 = arith.constant 0 : index
      %26 = vector.load %arg8[%c0_18, %c0_19] : memref<16x128xf32, #tpu.memory_space<vmem>>, vector<16x128xf32>
      %c0_20 = arith.constant 0 : index
      %c0_21 = arith.constant 0 : index
      %27 = vector.load %arg6[%c0_20, %c0_21] : memref<1x128xf32, #tpu.memory_space<vmem>>, vector<1x128xf32>
      %28 = vector.broadcast %27 : vector<1x128xf32> to vector<16x128xf32>
      %29 = arith.addf %26, %28 : vector<16x128xf32>
      %c0_22 = arith.constant 0 : index
      %c0_23 = arith.constant 0 : index
      %30 = vector.load %arg7[%c0_22, %c0_23] : memref<16x128xf32, #tpu.memory_space<vmem>>, vector<16x128xf32>
      tpu.vector_store %arg7[%c0_22, %c0_23], %29 {strides = array<i32>} : memref<16x128xf32, #tpu.memory_space<vmem>>, vector<16x128xf32>,
    } else {
    }
    return
  }
  func.func @transform_0(%arg0: i32, %arg1: i32) -> (i32, i32) {
    %c0_i32 = arith.constant 0 : i32
    %c0_i32_0 = arith.constant 0 : i32
    return %arg0, %c0_i32 : i32, i32
  }
  func.func @transform_1(%arg0: i32, %arg1: i32) -> (i32, i32) {
    %c0_i32 = arith.constant 0 : i32
    %c0_i32_0 = arith.constant 0 : i32
    return %c0_i32, %arg1 : i32, i32
  }
  func.func @transform_2(%arg0: i32, %arg1: i32) -> (i32, i32) {
    %c0_i32 = arith.constant 0 : i32
    %c0_i32_0 = arith.constant 0 : i32
    return %c0_i32, %arg1 : i32, i32
  }
  func.func @transform_3(%arg0: i32, %arg1: i32) -> (i32, i32) {
    %c0_i32 = arith.constant 0 : i32
    %c0_i32_0 = arith.constant 0 : i32
    return %arg1, %c0_i32 : i32, i32
  }
  func.func @transform_4(%arg0: i32, %arg1: i32) -> (i32, i32) {
    %c0_i32 = arith.constant 0 : i32
    %c0_i32_0 = arith.constant 0 : i32
    %c0_i32_1 = arith.constant 0 : i32
    return %c0_i32, %c0_i32_0 : i32, i32
  }
  func.func @transform_5(%arg0: i32, %arg1: i32) -> (i32, i32) {
    %c0_i32 = arith.constant 0 : i32
    %c0_i32_0 = arith.constant 0 : i32
    return %arg0, %c0_i32 : i32, i32
  }
}

</mosaic_0001>

<llo_original>
// kernel: feed_forward.1
$region0: #{feed_forward.1}
  #allocation0 [shape = 'u32[]', space=smem, size = 0x4, offset = 0x4, fixed_abs, tag = 'smem constant byte address 0x4 - core index']
  #allocation1 [shape = 'u32[144,128]{1,0:T(1,128)}', space=vmem, size = 0x12000, scoped, tag = 'internal scratch']
  #allocation2 [shape = 'f32[16,128]{1,0:T(8,128)}', space=vmem, size = 0x2000, scoped, tag = 'scratch operand']
  %s0 = inlined_call_operand.vmem [shape: bf16[16,128], index: 0, kind: input, shape index: {}]
  %s1 = inlined_call_operand.vmem [shape: bf16[128,128], index: 1, kind: input, shape index: {}]
  %s2 = inlined_call_operand.vmem [shape: f32[1,128], index: 2, kind: input, shape index: {}]
  %s3 = inlined_call_operand.vmem [shape: bf16[128,128], index: 3, kind: input, shape index: {}]
  %s4 = inlined_call_operand.vmem [shape: f32[1,128], index: 4, kind: input, shape index: {}]
  %s5 = inlined_call_operand.vmem [shape: f32[16,128], index: 5, kind: output, shape index: {}]
  %s6 = sld [smem:[#allocation0]]
  $region38: #{feed_forward.1} parent=0
    _
  %s8 = ssub.s32 1, %s6
  %s9 = scalar_select 0, %s8, %s6
  // Predicated region
  $region2: #{feed_forward.1} parent=0 // pred_check
    _
  $region3: #{feed_forward.1} parent=0 // pred_check_branch
    %11 = sbr.rel (0) target = $region5
  $region4: #{feed_forward.1} parent=0 // pred_region
    _
  $region5: #{feed_forward.1} parent=0 // pred_fallthru
    _
  // Predicated region
  $region6: #{feed_forward.1} parent=0 // pred_check
    _
  $region7: #{feed_forward.1} parent=0 // pred_check_branch
    %13 = sbr.rel (0) target = $region9
  $region8: #{feed_forward.1} parent=0 // pred_region
    _
  $region9: #{feed_forward.1} parent=0 // pred_fallthru
    _
  // Predicated region
  $region10: #{feed_forward.1} parent=0 // pred_check
    _
  $region11: #{feed_forward.1} parent=0 // pred_check_branch
    %15 = sbr.rel (0) target = $region13
  $region12: #{feed_forward.1} parent=0 // pred_region
    _
  $region13: #{feed_forward.1} parent=0 // pred_fallthru
    _
  // Predicated region
  $region14: #{feed_forward.1} parent=0 // pred_check
    _
  $region15: #{feed_forward.1} parent=0 // pred_check_branch
    %17 = sbr.rel (0) target = $region17
  $region16: #{feed_forward.1} parent=0 // pred_region
    _
  $region17: #{feed_forward.1} parent=0 // pred_fallthru
    _
  // Predicated region
  $region18: #{feed_forward.1} parent=0 // pred_check
    _
  $region19: #{feed_forward.1} parent=0 // pred_check_branch
    %19 = sbr.rel (0) target = $region21
  $region20: #{feed_forward.1} parent=0 // pred_region
    _
  $region21: #{feed_forward.1} parent=0 // pred_fallthru
    _
  %p21 = scmp.eq.s32.totalorder 0, 0
  // Predicated region
  $region22: #{feed_forward.1} parent=0 // pred_check
    %p22 = pneg %p21
  $region23: #{feed_forward.1} parent=0 // pred_check_branch
    %24 = sbr.rel (%p22) target = $region25
  $region24: #{feed_forward.1} parent=0 // pred_region
    %25 = vst [vmem:[#allocation2] sm:$0xff] 0.0
    %26 = vst [vmem:[#allocation2 + $0x8] sm:$0xff] 0.0
  $region25: #{feed_forward.1} parent=0 // pred_fallthru
    _
  %v27 = vld [vmem:[%s0] sm:$0xf]
  %v28 = vld [vmem:[%s0 + $0x4] sm:$0xf]
  %v29 = vld [vmem:[%s1] sm:$0xf]
  %v30 = vld [vmem:[%s1 + $0x4] sm:$0xf]
  %v31 = vld [vmem:[%s1 + $0x8] sm:$0xf]
  %v32 = vld [vmem:[%s1 + $0xc] sm:$0xf]
  %v33 = vld [vmem:[%s1 + $0x10] sm:$0xf]
  %v34 = vld [vmem:[%s1 + $0x14] sm:$0xf]
  %v35 = vld [vmem:[%s1 + $0x18] sm:$0xf]
  %v36 = vld [vmem:[%s1 + $0x1c] sm:$0xf]
  %v37 = vld [vmem:[%s1 + $0x20] sm:$0xf]
  %v38 = vld [vmem:[%s1 + $0x24] sm:$0xf]
  %v39 = vld [vmem:[%s1 + $0x28] sm:$0xf]
  %v40 = vld [vmem:[%s1 + $0x2c] sm:$0xf]
  %v41 = vld [vmem:[%s1 + $0x30] sm:$0xf]
  %v42 = vld [vmem:[%s1 + $0x34] sm:$0xf]
  %v43 = vld [vmem:[%s1 + $0x38] sm:$0xf]
  %v44 = vld [vmem:[%s1 + $0x3c] sm:$0xf]
  %v45 = vld [vmem:[%s2] sm:$0x1]
  %v47 = vlaneseq
  %v48 = vshrl.u32 %v47, 7
  %v49 = vsub.s32 0, %v48
  %v50 = vrot.slane %v45, %v49
  %v54 = vunpack.c.l.b16 %v27
  %v55 = vunpack.c.l.b16 %v28
  %v56 = vpack.c.b16 %v55, %v54
  %v74 = vunpack.c.l.b16 %v29
  %v75 = vunpack.c.l.b16 %v30
  %v76 = vunpack.c.l.b16 %v31
  %v77 = vunpack.c.l.b16 %v32
  %v78 = vunpack.c.l.b16 %v33
  %v79 = vunpack.c.l.b16 %v34
  %v80 = vunpack.c.l.b16 %v35
  %v81 = vunpack.c.l.b16 %v36
  %v82 = vunpack.c.l.b16 %v37
  %v83 = vunpack.c.l.b16 %v38
  %v84 = vunpack.c.l.b16 %v39
  %v85 = vunpack.c.l.b16 %v40
  %v86 = vunpack.c.l.b16 %v41
  %v87 = vunpack.c.l.b16 %v42
  %v88 = vunpack.c.l.b16 %v43
  %v89 = vunpack.c.l.b16 %v44
  %v90 = vpack.c.b16 %v75, %v74
  %v91 = vpack.c.b16 %v77, %v76
  %v92 = vpack.c.b16 %v79, %v78
  %v93 = vpack.c.b16 %v81, %v80
  %v94 = vpack.c.b16 %v83, %v82
  %v95 = vpack.c.b16 %v85, %v84
  %v96 = vpack.c.b16 %v87, %v86
  %v97 = vpack.c.b16 %v89, %v88
  %106 = vmatprep.subr.bf16.mxu0 0
  %107 = vmatpush1.bf16.msra.mxu0 %v97
  %108 = vmatprep.subr.bf16.mxu0 0
  %109 = vmatpush1.bf16.msra.mxu0 %v96
  %110 = vmatprep.subr.bf16.mxu0 0
  %111 = vmatpush1.bf16.msra.mxu0 %v95
  %112 = vmatprep.subr.bf16.mxu0 0
  %113 = vmatpush1.bf16.msra.mxu0 %v94
  %114 = vmatprep.subr.bf16.mxu0 0
  %115 = vmatpush1.bf16.msra.mxu0 %v93
  %116 = vmatprep.subr.bf16.mxu0 0
  %117 = vmatpush1.bf16.msra.mxu0 %v92
  %118 = vmatprep.subr.bf16.mxu0 0
  %119 = vmatpush1.bf16.msra.mxu0 %v91
  %120 = vmatprep.subr.bf16.mxu0 0
  %121 = vmatpush1.bf16.msra.mxu0 %v90
  %122 = vmatprep.subr.bf16.mxu0 0
  %123 = vmatpush2.bf16.msra.mxu0 0
  %124 = vmatprep.subr.bf16.mxu0 0
  %125 = vmatpush2.bf16.msra.mxu0 0
  %126 = vmatprep.subr.bf16.mxu0 0
  %127 = vmatpush2.bf16.msra.mxu0 0
  %128 = vmatprep.subr.bf16.mxu0 0
  %129 = vmatpush2.bf16.msra.mxu0 0
  %130 = vmatprep.subr.bf16.mxu0 0
  %131 = vmatpush2.bf16.msra.mxu0 0
  %132 = vmatprep.subr.bf16.mxu0 0
  %133 = vmatpush2.bf16.msra.mxu0 0
  %134 = vmatprep.subr.bf16.mxu0 0
  %135 = vmatpush2.bf16.msra.mxu0 0
  %136 = vmatprep.subr.bf16.mxu0 0
  %137 = vmatpush2.bf16.msra.mxu0 0
  %138 = vmatprep.mubr.bf16.mxu0 0
  %139 = vmatmul.mubr.bf16.gmra.mxu0 %v56
  %v140 = vpop.f32.mrf.mxu0
  %v141 = vadd.f32 %v50, %v140
  %v142 = vpop.f32.mrf.mxu0
  %v143 = vpop.f32.mrf.mxu0
  %v144 = vadd.f32 %v50, %v143
  %v145 = vpop.f32.mrf.mxu0
  %146 = vdwg.mxu0
  %v147 = vmul.f32 %v141, 0.5
  %v148 = vmul.f32 %v144, 0.5
  %v149 = vmul.f32 %v141, 0.70710677
  %v150 = vmul.f32 %v144, 0.70710677
  %v151 = verf.f32.pop %v149
  %v152 = verf.f32.pop %v150
  %v153 = vadd.f32 %v151, 1.0
  %v154 = vadd.f32 %v152, 1.0
  %v155 = vmul.f32 %v147, %v153
  %v156 = vmul.f32 %v148, %v154
  %v157 = vld [vmem:[#allocation2] sm:$0xff]
  %v158 = vld [vmem:[#allocation2 + $0x8] sm:$0xff]
  %v159 = vpack.c.bf16 %v156, %v155
  %v160 = vld [vmem:[%s3] sm:$0xf]
  %v161 = vld [vmem:[%s3 + $0x4] sm:$0xf]
  %v162 = vld [vmem:[%s3 + $0x8] sm:$0xf]
  %v163 = vld [vmem:[%s3 + $0xc] sm:$0xf]
  %v164 = vld [vmem:[%s3 + $0x10] sm:$0xf]
  %v165 = vld [vmem:[%s3 + $0x14] sm:$0xf]
  %v166 = vld [vmem:[%s3 + $0x18] sm:$0xf]
  %v167 = vld [vmem:[%s3 + $0x1c] sm:$0xf]
  %v168 = vld [vmem:[%s3 + $0x20] sm:$0xf]
  %v169 = vld [vmem:[%s3 + $0x24] sm:$0xf]
  %v170 = vld [vmem:[%s3 + $0x28] sm:$0xf]
  %v171 = vld [vmem:[%s3 + $0x2c] sm:$0xf]
  %v172 = vld [vmem:[%s3 + $0x30] sm:$0xf]
  %v173 = vld [vmem:[%s3 + $0x34] sm:$0xf]
  %v174 = vld [vmem:[%s3 + $0x38] sm:$0xf]
  %v175 = vld [vmem:[%s3 + $0x3c] sm:$0xf]
  %v192 = vunpack.c.l.b16 %v160
  %v193 = vunpack.c.l.b16 %v161
  %v194 = vunpack.c.l.b16 %v162
  %v195 = vunpack.c.l.b16 %v163
  %v196 = vunpack.c.l.b16 %v164
  %v197 = vunpack.c.l.b16 %v165
  %v198 = vunpack.c.l.b16 %v166
  %v199 = vunpack.c.l.b16 %v167
  %v200 = vunpack.c.l.b16 %v168
  %v201 = vunpack.c.l.b16 %v169
  %v202 = vunpack.c.l.b16 %v170
  %v203 = vunpack.c.l.b16 %v171
  %v204 = vunpack.c.l.b16 %v172
  %v205 = vunpack.c.l.b16 %v173
  %v206 = vunpack.c.l.b16 %v174
  %v207 = vunpack.c.l.b16 %v175
  %v208 = vpack.c.b16 %v193, %v192
  %v209 = vpack.c.b16 %v195, %v194
  %v210 = vpack.c.b16 %v197, %v196
  %v211 = vpack.c.b16 %v199, %v198
  %v212 = vpack.c.b16 %v201, %v200
  %v213 = vpack.c.b16 %v203, %v202
  %v214 = vpack.c.b16 %v205, %v204
  %v215 = vpack.c.b16 %v207, %v206
  %224 = vmatprep.subr.bf16.mxu0 0
  %225 = vmatpush1.bf16.msra.mxu0 %v215
  %226 = vmatprep.subr.bf16.mxu0 0
  %227 = vmatpush1.bf16.msra.mxu0 %v214
  %228 = vmatprep.subr.bf16.mxu0 0
  %229 = vmatpush1.bf16.msra.mxu0 %v213
  %230 = vmatprep.subr.bf16.mxu0 0
  %231 = vmatpush1.bf16.msra.mxu0 %v212
  %232 = vmatprep.subr.bf16.mxu0 0
  %233 = vmatpush1.bf16.msra.mxu0 %v211
  %234 = vmatprep.subr.bf16.mxu0 0
  %235 = vmatpush1.bf16.msra.mxu0 %v210
  %236 = vmatprep.subr.bf16.mxu0 0
  %237 = vmatpush1.bf16.msra.mxu0 %v209
  %238 = vmatprep.subr.bf16.mxu0 0
  %239 = vmatpush1.bf16.msra.mxu0 %v208
  %240 = vmatprep.subr.bf16.mxu0 0
  %241 = vmatpush2.bf16.msra.mxu0 0
  %242 = vmatprep.subr.bf16.mxu0 0
  %243 = vmatpush2.bf16.msra.mxu0 0
  %244 = vmatprep.subr.bf16.mxu0 0
  %245 = vmatpush2.bf16.msra.mxu0 0
  %246 = vmatprep.subr.bf16.mxu0 0
  %247 = vmatpush2.bf16.msra.mxu0 0
  %248 = vmatprep.subr.bf16.mxu0 0
  %249 = vmatpush2.bf16.msra.mxu0 0
  %250 = vmatprep.subr.bf16.mxu0 0
  %251 = vmatpush2.bf16.msra.mxu0 0
  %252 = vmatprep.subr.bf16.mxu0 0
  %253 = vmatpush2.bf16.msra.mxu0 0
  %254 = vmatprep.subr.bf16.mxu0 0
  %255 = vmatpush2.bf16.msra.mxu0 0
  %256 = vmatprep.mubr.bf16.mxu0 0
  %257 = vmatmul.mubr.bf16.gmra.mxu0 %v159
  %v258 = vpop.f32.mrf.mxu0
  %v259 = vadd.f32 0.0, %v258
  %v260 = vpop.f32.mrf.mxu0
  %v261 = vpop.f32.mrf.mxu0
  %v262 = vadd.f32 0.0, %v261
  %v263 = vpop.f32.mrf.mxu0
  %264 = vdwg.mxu0
  %v265 = vadd.f32 %v157, %v259
  %v266 = vadd.f32 %v158, %v262
  %267 = vst [vmem:[#allocation2] sm:$0xff] %v265
  %268 = vst [vmem:[#allocation2 + $0x8] sm:$0xff] %v266
  // Predicated region
  $region26: #{feed_forward.1} parent=0 // pred_check
    %p269 = pneg %p21
  $region27: #{feed_forward.1} parent=0 // pred_check_branch
    %271 = sbr.rel (%p269) target = $region29
  $region28: #{feed_forward.1} parent=0 // pred_region
    %v272 = vld [vmem:[#allocation2] sm:$0xff]
    %v273 = vld [vmem:[#allocation2 + $0x8] sm:$0xff]
    %v274 = vld [vmem:[%s4] sm:$0x1]
    %v276 = vlaneseq
    %v277 = vshrl.u32 %v276, 7
    %v278 = vsub.s32 0, %v277
    %v279 = vrot.slane %v274, %v278
    %v281 = vadd.f32 %v272, %v279
    %v282 = vadd.f32 %v273, %v279
    %283 = vst [vmem:[%s5] sm:$0xff] %v281
    %284 = vst [vmem:[%s5 + $0x8] sm:$0xff] %v282
  $region29: #{feed_forward.1} parent=0 // pred_fallthru
    _
  // Predicated region
  $region30: #{feed_forward.1} parent=0 // pred_check
    _
  $region31: #{feed_forward.1} parent=0 // pred_check_branch
    %286 = sbr.rel (0) target = $region33
  $region32: #{feed_forward.1} parent=0 // pred_region
    _
  $region33: #{feed_forward.1} parent=0 // pred_fallthru
    _
  // Predicated region
  $region34: #{feed_forward.1} parent=0 // pred_check
    _
  $region35: #{feed_forward.1} parent=0 // pred_check_branch
    %288 = sbr.rel (0) target = $region37
  $region36: #{feed_forward.1} parent=0 // pred_region
    _
  $region37: #{feed_forward.1} parent=0 // pred_fallthru
    _

</llo_original>
